<compile_context>
chip_gen: v7x
topology: tpu7x:2x2x1
jax: 0.10.0
libtpu: 0.0.40
codegen_flags: <defaults>
</compile_context>

<pallas_src>
import math
import functools

import jax
import jax.numpy as jnp
from jax.experimental import pallas as pl
from jax.experimental.pallas import tpu as pltpu


LANE = 128


# ---------------------------------------------------------------------------
# Fused Pallas kernel (all tensors carried transposed: features on sublanes,
# nodes on lanes)
# ---------------------------------------------------------------------------

def _gcnii_fused_kernel(xT_ref, adj_ref, w0T_ref, b0_ref, wstkT_ref, w1T_ref,
                        b1_ref, distrT_ref, xoutT_ref, *, num_layers, alpha):
    f32 = jnp.float32
    bf16 = jnp.bfloat16

    # adj arrives f32 straight from HBM (no wrapper rescale pass); cast to bf16
    # once in VMEM and keep it as a value for all layers.
    adj_bf = adj_ref[...].astype(bf16)                      # (N, N)

    # ---- lin0 + relu:  x_0^T = relu(W0^T @ x^T + b0) ------------------------
    h0 = jnp.dot(w0T_ref[...], xT_ref[...].astype(bf16),
                 preferred_element_type=f32)                # (H, N)
    x = jnp.maximum(h0 + b0_ref[...], 0.0)                  # b0 is (H, 1)
    x0a = alpha * x                                         # alpha * x_0^T
    one_m_alpha = 1.0 - alpha

    # ---- GCN2 layers ---------------------------------------------------------
    def layer_step(l, xc):
        xoutT_ref[l] = xc                                   # lane-dense (H, N) store
        # (A' @ x)^T = x^T @ A'   (A' symmetric)
        ax = jnp.dot(xc.astype(bf16), adj_bf, preferred_element_type=f32)
        hmix = one_m_alpha * ax + x0a                       # (1-a)*Ax + a*x0, transposed
        # (hmix @ W_eff)^T = W_eff^T @ hmix^T ;  wstkT holds W_eff^T per layer
        hw = jnp.dot(wstkT_ref[l], hmix.astype(bf16), preferred_element_type=f32)
        return jnp.maximum(hw, 0.0)

    if num_layers <= 8:
        for l in range(num_layers):                         # small L: static unroll
            x = layer_step(l, x)
    else:                                                   # large L: rolled loop
        x = jax.lax.fori_loop(0, num_layers, layer_step, x)

    xoutT_ref[num_layers] = x                               # activation after last conv

    # ---- lin1 + log_softmax (classes on sublanes; padded rows bias = -1e30) --
    logits = jnp.dot(w1T_ref[...], x.astype(bf16),
                     preferred_element_type=f32)            # (C_pad, N)
    logits = logits + b1_ref[...]                           # b1 is (C_pad, 1)
    m = jnp.max(logits, axis=0, keepdims=True)              # (1, N)
    shifted = logits - m
    lse = jnp.log(jnp.sum(jnp.exp(shifted), axis=0, keepdims=True))
    distrT_ref[...] = (shifted - lse).astype(distrT_ref.dtype)


# ---------------------------------------------------------------------------
# Wrapper
# ---------------------------------------------------------------------------

def _nbytes(shape, dtype):
    size = 1
    for s in shape:
        size *= int(s)
    return size * jnp.dtype(dtype).itemsize


def gcnii_forward_fused(x, adj_t, params, *, alpha, theta, num_layers, num_classes):
    n, f = x.shape
    hid = params["w0"].shape[1]

    # --- transposed, pre-folded operands (all small except xT; adj untouched) -
    xT = jnp.transpose(x)                                    # (F, N) f32
    w0T = jnp.transpose(params["w0"]).astype(jnp.bfloat16)   # (H, F)
    b0c = params["b0"].reshape(hid, 1).astype(jnp.float32)   # (H, 1)

    eye = jnp.eye(hid, dtype=jnp.float32)
    w_effT = []
    for l in range(num_layers):
        beta = math.log(theta / (l + 1) + 1.0)
        w_eff = beta * params["conv_ws"][l] + (1.0 - beta) * eye
        w_effT.append(jnp.transpose(w_eff))                  # W_eff^T
    w_stkT = jnp.stack(w_effT).astype(jnp.bfloat16)          # (L, H, H)

    c_pad = ((num_classes + LANE - 1) // LANE) * LANE
    w1T = jnp.zeros((c_pad, hid), jnp.float32).at[:num_classes, :].set(
        jnp.transpose(params["w1"]))
    w1T = w1T.astype(jnp.bfloat16)                           # (C_pad, H)
    b1c = jnp.full((c_pad, 1), -1e30, jnp.float32).at[:num_classes, 0].set(params["b1"])

    adj_f32 = adj_t.astype(jnp.float32)                      # no-op if already f32

    # --- VMEM budget sized to actual resident buffers (v5e default is ~16 MiB) -
    resident = (
        _nbytes((n, n), jnp.float32)                 # adj input ref
        + _nbytes((n, n), jnp.bfloat16)              # in-kernel bf16 adj copy
        + _nbytes((f, n), jnp.float32)               # xT
        + _nbytes((hid, f), jnp.bfloat16) + _nbytes((hid, 1), jnp.float32)
        + _nbytes((num_layers, hid, hid), jnp.bfloat16)
        + _nbytes((c_pad, hid), jnp.bfloat16) + _nbytes((c_pad, 1), jnp.float32)
        + _nbytes((c_pad, n), jnp.float32)           # distr^T output
        + _nbytes((num_layers + 1, hid, n), jnp.float32)   # stacked activations
        + 4 * _nbytes((hid, n), jnp.float32)         # live activation values
    )
    vmem_limit = min(max(2 * resident + (8 << 20), 32 << 20), 60 << 20)

    kernel = functools.partial(_gcnii_fused_kernel,
                               num_layers=num_layers, alpha=float(alpha))
    vmem = pltpu.MemorySpace.VMEM

    distrT_pad, xoutT = pl.pallas_call(
        kernel,
        out_shape=(jax.ShapeDtypeStruct((c_pad, n), jnp.float32),
                   jax.ShapeDtypeStruct((num_layers + 1, hid, n), jnp.float32)),
        in_specs=[pl.BlockSpec(memory_space=vmem)] * 7,
        out_specs=(pl.BlockSpec(memory_space=vmem),
                   pl.BlockSpec(memory_space=vmem)),
        compiler_params=pltpu.CompilerParams(vmem_limit_bytes=int(vmem_limit)),
    )(xT, adj_f32, w0T, b0c, w_stkT, w1T, b1c)

    distr = jnp.transpose(distrT_pad[:num_classes, :])       # (N, C)
    x_out_list = [jnp.transpose(xoutT[l]) for l in range(num_layers + 1)] + [distr]
    return distr, x_out_list


# ---------------------------------------------------------------------------
# GCNII model (parameters initialized deterministically in-script)
# ---------------------------------------------------------------------------

class GCNIIPallas:
    def __init__(self, hidden_channels, num_layers, alpha, theta,
                 num_features, num_classes, *, key, dropout=0.0, norm=False):
        self.alpha = alpha
        self.theta = theta
        self.num_layers = num_layers
        self.num_classes = num_classes
        self.dropout = dropout          # 0.0 -> identity (eval semantics)
        self.norm = norm                # False (module default)

        keys = jax.random.split(key, 4 + num_layers)

        # lins[0]: Linear(num_features -> hidden), torch-style uniform init
        bound0 = 1.0 / math.sqrt(num_features)
        w0 = jax.random.uniform(keys[0], (num_features, hidden_channels),
                                jnp.float32, -bound0, bound0)
        b0 = jax.random.uniform(keys[1], (hidden_channels,),
                                jnp.float32, -bound0, bound0)

        # lins[1]: Linear(hidden -> num_classes)
        bound1 = 1.0 / math.sqrt(hidden_channels)
        w1 = jax.random.uniform(keys[2], (hidden_channels, num_classes),
                                jnp.float32, -bound1, bound1)
        b1 = jax.random.uniform(keys[3], (num_classes,),
                                jnp.float32, -bound1, bound1)

        # GCN2Conv weight1 per layer: (hidden, hidden), glorot init, no bias
        glorot = math.sqrt(6.0 / (hidden_channels + hidden_channels))
        conv_ws = [
            jax.random.uniform(keys[4 + l], (hidden_channels, hidden_channels),
                               jnp.float32, -glorot, glorot)
            for l in range(num_layers)
        ]

        self.params = {"w0": w0, "b0": b0, "w1": w1, "b1": b1, "conv_ws": conv_ws}

    def __call__(self, x, adj_t):
        return gcnii_forward_fused(
            x, adj_t, self.params,
            alpha=self.alpha, theta=self.theta,
            num_layers=self.num_layers, num_classes=self.num_classes)


# ---------------------------------------------------------------------------
# Main
# ---------------------------------------------------------------------------

if __name__ == "__main__":
    N = 128           # number of graph nodes (multiple of 128 -> lane-dense)
    NUM_FEATURES = 16
    HIDDEN = 32
    NUM_CLASSES = 8
    NUM_LAYERS = 4
    ALPHA = 0.1
    THETA = 0.5

    key = jax.random.PRNGKey(0)
    k_x, k_adj, k_params = jax.random.split(key, 3)

    x = jax.random.normal(k_x, (N, NUM_FEATURES), jnp.float32)

    # synthetic dense (already-normalized) adjacency: random sparse-ish nonneg
    # matrix with symmetric degree normalization
    a = jax.random.uniform(k_adj, (N, N), jnp.float32)
    a = jnp.where(a > 0.8, a, 0.0)
    a = a + a.T + jnp.eye(N, dtype=jnp.float32)
    deg = jnp.sum(a, axis=1)
    dinv = 1.0 / jnp.sqrt(deg)
    adj_t = dinv[:, None] * a * dinv[None, :]

    model = GCNIIPallas(HIDDEN, NUM_LAYERS, ALPHA, THETA,
                        NUM_FEATURES, NUM_CLASSES, key=k_params)

    distr, x_out_list = model(x, adj_t)
    jax.block_until_ready(distr)
    for arr in x_out_list:
        jax.block_until_ready(arr)

    assert distr.shape == (N, NUM_CLASSES)
    assert len(x_out_list) == NUM_LAYERS + 2
    assert all(arr.shape == (N, HIDDEN) for arr in x_out_list[:-1])
    # rows of log_softmax output must (exp-)sum to ~1
    row_sums = jnp.sum(jnp.exp(distr), axis=-1)
    assert bool(jnp.all(jnp.abs(row_sums - 1.0) < 1e-3))
    assert bool(jnp.all(jnp.isfinite(distr)))

    print("KERNEL_OK")
</pallas_src>

<mosaic_0001>
module attributes {stable_mosaic.version = 11 : i64} {
  func.func @_gcnii_fused_kernel(%arg0: memref<16x128xf32, #tpu.memory_space<vmem>>, %arg1: memref<128x128xf32, #tpu.memory_space<vmem>>, %arg2: memref<32x16xbf16, #tpu.memory_space<vmem>>, %arg3: memref<32x1xf32, #tpu.memory_space<vmem>>, %arg4: memref<4x32x32xbf16, #tpu.memory_space<vmem>>, %arg5: memref<128x32xbf16, #tpu.memory_space<vmem>>, %arg6: memref<128x1xf32, #tpu.memory_space<vmem>>, %arg7: memref<128x128xf32, #tpu.memory_space<vmem>>, %arg8: memref<5x32x128xf32, #tpu.memory_space<vmem>>) attributes {dimension_semantics = [], scalar_prefetch = 0 : i64, scratch_operands = 0 : i64, tpu.core_type = #tpu.core_type<tc>} {
    %c0 = arith.constant 0 : index
    %c0_0 = arith.constant 0 : index
    %0 = vector.load %arg1[%c0, %c0_0] : memref<128x128xf32, #tpu.memory_space<vmem>>, vector<128x128xf32>
    %1 = arith.truncf %0 : vector<128x128xf32> to vector<128x128xbf16>
    %c0_1 = arith.constant 0 : index
    %c0_2 = arith.constant 0 : index
    %2 = vector.load %arg2[%c0_1, %c0_2] : memref<32x16xbf16, #tpu.memory_space<vmem>>, vector<32x16xbf16>
    %c0_3 = arith.constant 0 : index
    %c0_4 = arith.constant 0 : index
    %3 = vector.load %arg0[%c0_3, %c0_4] : memref<16x128xf32, #tpu.memory_space<vmem>>, vector<16x128xf32>
    %4 = arith.truncf %3 : vector<16x128xf32> to vector<16x128xbf16>
    %cst = arith.constant dense<0.000000e+00> : vector<32x128xf32>
    %5 = tpu.matmul %2, %4, %cst {dimension_numbers = #tpu.dot_dimension_numbers<[1], [0], [0], [1], [0, 0, 1, 1], [], []>} : vector<32x16xbf16>, vector<16x128xbf16>, vector<32x128xf32> -> vector<32x128xf32>
    %c0_5 = arith.constant 0 : index
    %c0_6 = arith.constant 0 : index
    %6 = vector.load %arg3[%c0_5, %c0_6] : memref<32x1xf32, #tpu.memory_space<vmem>>, vector<32x1xf32>
    %7 = vector.broadcast %6 : vector<32x1xf32> to vector<32x128xf32>
    %8 = arith.addf %5, %7 : vector<32x128xf32>
    %cst_7 = arith.constant 0.000000e+00 : f32
    %9 = vector.broadcast %cst_7 : f32 to vector<32x128xf32>
    %10 = arith.maximumf %8, %9 : vector<32x128xf32>
    %cst_8 = arith.constant 1.000000e-01 : f32
    %11 = vector.broadcast %cst_8 : f32 to vector<32x128xf32>
    %12 = arith.mulf %11, %10 : vector<32x128xf32>
    %c0_9 = arith.constant 0 : index
    %c0_10 = arith.constant 0 : index
    %c0_11 = arith.constant 0 : index
    %13 = vector.load %arg8[%c0_9, %c0_10, %c0_11] : memref<5x32x128xf32, #tpu.memory_space<vmem>>, vector<1x32x128xf32>
    %14 = vector.shape_cast %13 : vector<1x32x128xf32> to vector<32x128xf32>
    %15 = vector.shape_cast %10 : vector<32x128xf32> to vector<1x32x128xf32>
    tpu.vector_store %arg8[%c0_9, %c0_10, %c0_11], %15 {strides = array<i32>} : memref<5x32x128xf32, #tpu.memory_space<vmem>>, vector<1x32x128xf32>,
    %16 = arith.truncf %10 : vector<32x128xf32> to vector<32x128xbf16>
    %cst_12 = arith.constant dense<0.000000e+00> : vector<32x128xf32>
    %17 = tpu.matmul %16, %1, %cst_12 {dimension_numbers = #tpu.dot_dimension_numbers<[1], [0], [0], [1], [0, 0, 1, 1], [], []>} : vector<32x128xbf16>, vector<128x128xbf16>, vector<32x128xf32> -> vector<32x128xf32>
    %cst_13 = arith.constant 0.899999976 : f32
    %18 = vector.broadcast %cst_13 : f32 to vector<32x128xf32>
    %19 = arith.mulf %18, %17 : vector<32x128xf32>
    %20 = arith.addf %19, %12 : vector<32x128xf32>
    %c0_14 = arith.constant 0 : index
    %c0_15 = arith.constant 0 : index
    %c0_16 = arith.constant 0 : index
    %21 = vector.load %arg4[%c0_14, %c0_15, %c0_16] : memref<4x32x32xbf16, #tpu.memory_space<vmem>>, vector<1x32x32xbf16>
    %22 = vector.shape_cast %21 : vector<1x32x32xbf16> to vector<32x32xbf16>
    %23 = arith.truncf %20 : vector<32x128xf32> to vector<32x128xbf16>
    %cst_17 = arith.constant dense<0.000000e+00> : vector<32x128xf32>
    %24 = tpu.matmul %22, %23, %cst_17 {dimension_numbers = #tpu.dot_dimension_numbers<[1], [0], [0], [1], [0, 0, 1, 1], [], []>} : vector<32x32xbf16>, vector<32x128xbf16>, vector<32x128xf32> -> vector<32x128xf32>
    %cst_18 = arith.constant 0.000000e+00 : f32
    %25 = vector.broadcast %cst_18 : f32 to vector<32x128xf32>
    %26 = arith.maximumf %24, %25 : vector<32x128xf32>
    %c1 = arith.constant 1 : index
    %c0_19 = arith.constant 0 : index
    %c0_20 = arith.constant 0 : index
    %27 = vector.load %arg8[%c1, %c0_19, %c0_20] : memref<5x32x128xf32, #tpu.memory_space<vmem>>, vector<1x32x128xf32>
    %28 = vector.shape_cast %27 : vector<1x32x128xf32> to vector<32x128xf32>
    %29 = vector.shape_cast %26 : vector<32x128xf32> to vector<1x32x128xf32>
    tpu.vector_store %arg8[%c1, %c0_19, %c0_20], %29 {strides = array<i32>} : memref<5x32x128xf32, #tpu.memory_space<vmem>>, vector<1x32x128xf32>,
    %30 = arith.truncf %26 : vector<32x128xf32> to vector<32x128xbf16>
    %cst_21 = arith.constant dense<0.000000e+00> : vector<32x128xf32>
    %31 = tpu.matmul %30, %1, %cst_21 {dimension_numbers = #tpu.dot_dimension_numbers<[1], [0], [0], [1], [0, 0, 1, 1], [], []>} : vector<32x128xbf16>, vector<128x128xbf16>, vector<32x128xf32> -> vector<32x128xf32>
    %cst_22 = arith.constant 0.899999976 : f32
    %32 = vector.broadcast %cst_22 : f32 to vector<32x128xf32>
    %33 = arith.mulf %32, %31 : vector<32x128xf32>
    %34 = arith.addf %33, %12 : vector<32x128xf32>
    %c1_23 = arith.constant 1 : index
    %c0_24 = arith.constant 0 : index
    %c0_25 = arith.constant 0 : index
    %35 = vector.load %arg4[%c1_23, %c0_24, %c0_25] : memref<4x32x32xbf16, #tpu.memory_space<vmem>>, vector<1x32x32xbf16>
    %36 = vector.shape_cast %35 : vector<1x32x32xbf16> to vector<32x32xbf16>
    %37 = arith.truncf %34 : vector<32x128xf32> to vector<32x128xbf16>
    %cst_26 = arith.constant dense<0.000000e+00> : vector<32x128xf32>
    %38 = tpu.matmul %36, %37, %cst_26 {dimension_numbers = #tpu.dot_dimension_numbers<[1], [0], [0], [1], [0, 0, 1, 1], [], []>} : vector<32x32xbf16>, vector<32x128xbf16>, vector<32x128xf32> -> vector<32x128xf32>
    %cst_27 = arith.constant 0.000000e+00 : f32
    %39 = vector.broadcast %cst_27 : f32 to vector<32x128xf32>
    %40 = arith.maximumf %38, %39 : vector<32x128xf32>
    %c2 = arith.constant 2 : index
    %c0_28 = arith.constant 0 : index
    %c0_29 = arith.constant 0 : index
    %41 = vector.load %arg8[%c2, %c0_28, %c0_29] : memref<5x32x128xf32, #tpu.memory_space<vmem>>, vector<1x32x128xf32>
    %42 = vector.shape_cast %41 : vector<1x32x128xf32> to vector<32x128xf32>
    %43 = vector.shape_cast %40 : vector<32x128xf32> to vector<1x32x128xf32>
    tpu.vector_store %arg8[%c2, %c0_28, %c0_29], %43 {strides = array<i32>} : memref<5x32x128xf32, #tpu.memory_space<vmem>>, vector<1x32x128xf32>,
    %44 = arith.truncf %40 : vector<32x128xf32> to vector<32x128xbf16>
    %cst_30 = arith.constant dense<0.000000e+00> : vector<32x128xf32>
    %45 = tpu.matmul %44, %1, %cst_30 {dimension_numbers = #tpu.dot_dimension_numbers<[1], [0], [0], [1], [0, 0, 1, 1], [], []>} : vector<32x128xbf16>, vector<128x128xbf16>, vector<32x128xf32> -> vector<32x128xf32>
    %cst_31 = arith.constant 0.899999976 : f32
    %46 = vector.broadcast %cst_31 : f32 to vector<32x128xf32>
    %47 = arith.mulf %46, %45 : vector<32x128xf32>
    %48 = arith.addf %47, %12 : vector<32x128xf32>
    %c2_32 = arith.constant 2 : index
    %c0_33 = arith.constant 0 : index
    %c0_34 = arith.constant 0 : index
    %49 = vector.load %arg4[%c2_32, %c0_33, %c0_34] : memref<4x32x32xbf16, #tpu.memory_space<vmem>>, vector<1x32x32xbf16>
    %50 = vector.shape_cast %49 : vector<1x32x32xbf16> to vector<32x32xbf16>
    %51 = arith.truncf %48 : vector<32x128xf32> to vector<32x128xbf16>
    %cst_35 = arith.constant dense<0.000000e+00> : vector<32x128xf32>
    %52 = tpu.matmul %50, %51, %cst_35 {dimension_numbers = #tpu.dot_dimension_numbers<[1], [0], [0], [1], [0, 0, 1, 1], [], []>} : vector<32x32xbf16>, vector<32x128xbf16>, vector<32x128xf32> -> vector<32x128xf32>
    %cst_36 = arith.constant 0.000000e+00 : f32
    %53 = vector.broadcast %cst_36 : f32 to vector<32x128xf32>
    %54 = arith.maximumf %52, %53 : vector<32x128xf32>
    %c3 = arith.constant 3 : index
    %c0_37 = arith.constant 0 : index
    %c0_38 = arith.constant 0 : index
    %55 = vector.load %arg8[%c3, %c0_37, %c0_38] : memref<5x32x128xf32, #tpu.memory_space<vmem>>, vector<1x32x128xf32>
    %56 = vector.shape_cast %55 : vector<1x32x128xf32> to vector<32x128xf32>
    %57 = vector.shape_cast %54 : vector<32x128xf32> to vector<1x32x128xf32>
    tpu.vector_store %arg8[%c3, %c0_37, %c0_38], %57 {strides = array<i32>} : memref<5x32x128xf32, #tpu.memory_space<vmem>>, vector<1x32x128xf32>,
    %58 = arith.truncf %54 : vector<32x128xf32> to vector<32x128xbf16>
    %cst_39 = arith.constant dense<0.000000e+00> : vector<32x128xf32>
    %59 = tpu.matmul %58, %1, %cst_39 {dimension_numbers = #tpu.dot_dimension_numbers<[1], [0], [0], [1], [0, 0, 1, 1], [], []>} : vector<32x128xbf16>, vector<128x128xbf16>, vector<32x128xf32> -> vector<32x128xf32>
    %cst_40 = arith.constant 0.899999976 : f32
    %60 = vector.broadcast %cst_40 : f32 to vector<32x128xf32>
    %61 = arith.mulf %60, %59 : vector<32x128xf32>
    %62 = arith.addf %61, %12 : vector<32x128xf32>
    %c3_41 = arith.constant 3 : index
    %c0_42 = arith.constant 0 : index
    %c0_43 = arith.constant 0 : index
    %63 = vector.load %arg4[%c3_41, %c0_42, %c0_43] : memref<4x32x32xbf16, #tpu.memory_space<vmem>>, vector<1x32x32xbf16>
    %64 = vector.shape_cast %63 : vector<1x32x32xbf16> to vector<32x32xbf16>
    %65 = arith.truncf %62 : vector<32x128xf32> to vector<32x128xbf16>
    %cst_44 = arith.constant dense<0.000000e+00> : vector<32x128xf32>
    %66 = tpu.matmul %64, %65, %cst_44 {dimension_numbers = #tpu.dot_dimension_numbers<[1], [0], [0], [1], [0, 0, 1, 1], [], []>} : vector<32x32xbf16>, vector<32x128xbf16>, vector<32x128xf32> -> vector<32x128xf32>
    %cst_45 = arith.constant 0.000000e+00 : f32
    %67 = vector.broadcast %cst_45 : f32 to vector<32x128xf32>
    %68 = arith.maximumf %66, %67 : vector<32x128xf32>
    %c4 = arith.constant 4 : index
    %c0_46 = arith.constant 0 : index
    %c0_47 = arith.constant 0 : index
    %69 = vector.load %arg8[%c4, %c0_46, %c0_47] : memref<5x32x128xf32, #tpu.memory_space<vmem>>, vector<1x32x128xf32>
    %70 = vector.shape_cast %69 : vector<1x32x128xf32> to vector<32x128xf32>
    %71 = vector.shape_cast %68 : vector<32x128xf32> to vector<1x32x128xf32>
    tpu.vector_store %arg8[%c4, %c0_46, %c0_47], %71 {strides = array<i32>} : memref<5x32x128xf32, #tpu.memory_space<vmem>>, vector<1x32x128xf32>,
    %c0_48 = arith.constant 0 : index
    %c0_49 = arith.constant 0 : index
    %72 = vector.load %arg5[%c0_48, %c0_49] : memref<128x32xbf16, #tpu.memory_space<vmem>>, vector<128x32xbf16>
    %73 = arith.truncf %68 : vector<32x128xf32> to vector<32x128xbf16>
    %cst_50 = arith.constant dense<0.000000e+00> : vector<128x128xf32>
    %74 = tpu.matmul %72, %73, %cst_50 {dimension_numbers = #tpu.dot_dimension_numbers<[1], [0], [0], [1], [0, 0, 1, 1], [], []>} : vector<128x32xbf16>, vector<32x128xbf16>, vector<128x128xf32> -> vector<128x128xf32>
    %c0_51 = arith.constant 0 : index
    %c0_52 = arith.constant 0 : index
    %75 = vector.load %arg6[%c0_51, %c0_52] : memref<128x1xf32, #tpu.memory_space<vmem>>, vector<128x1xf32>
    %76 = vector.broadcast %75 : vector<128x1xf32> to vector<128x128xf32>
    %77 = arith.addf %74, %76 : vector<128x128xf32>
    %cst_53 = arith.constant dense<0xFF800000> : vector<128xf32>
    %78 = vector.multi_reduction <maximumf>, %77, %cst_53 [0] : vector<128x128xf32> to vector<128xf32>
    %79 = vector.shape_cast %78 : vector<128xf32> to vector<1x128xf32>
    %80 = vector.broadcast %79 : vector<1x128xf32> to vector<128x128xf32>
    %81 = arith.subf %77, %80 : vector<128x128xf32>
    %82 = math.exp %81 : vector<128x128xf32>
    %cst_54 = arith.constant dense<0.000000e+00> : vector<128xf32>
    %83 = vector.multi_reduction <add>, %82, %cst_54 [0] : vector<128x128xf32> to vector<128xf32>
    %84 = vector.shape_cast %83 : vector<128xf32> to vector<1x128xf32>
    %85 = math.log %84 : vector<1x128xf32>
    %86 = vector.broadcast %85 : vector<1x128xf32> to vector<128x128xf32>
    %87 = arith.subf %81, %86 : vector<128x128xf32>
    %c0_55 = arith.constant 0 : index
    %c0_56 = arith.constant 0 : index
    %88 = vector.load %arg7[%c0_55, %c0_56] : memref<128x128xf32, #tpu.memory_space<vmem>>, vector<128x128xf32>
    tpu.vector_store %arg7[%c0_55, %c0_56], %87 {strides = array<i32>} : memref<128x128xf32, #tpu.memory_space<vmem>>, vector<128x128xf32>,
    return
  }
}

</mosaic_0001>

<llo_original>
// kernel: tpu_custom_call.1
$region0: #{tpu_custom_call.1}
  #allocation0 [shape = 'u32[]', space=smem, size = 0x4, offset = 0x4, fixed_abs, tag = 'smem constant byte address 0x4 - core index']
  #allocation1 [shape = 'u32[144,128]{1,0:T(1,128)}', space=vmem, size = 0x12000, scoped, tag = 'internal scratch']
  %s0 = inlined_call_operand.vmem [shape: f32[16,128], index: 0, kind: input, shape index: {}]
  %s1 = inlined_call_operand.vmem [shape: f32[128,128], index: 1, kind: input, shape index: {}]
  %s2 = inlined_call_operand.vmem [shape: bf16[32,16], index: 2, kind: input, shape index: {}]
  %s3 = inlined_call_operand.vmem [shape: f32[32,1], index: 3, kind: input, shape index: {}]
  %s4 = inlined_call_operand.vmem [shape: bf16[4,32,32], index: 4, kind: input, shape index: {}]
  %s5 = inlined_call_operand.vmem [shape: bf16[128,32], index: 5, kind: input, shape index: {}]
  %s6 = inlined_call_operand.vmem [shape: f32[128,1], index: 6, kind: input, shape index: {}]
  %s7 = inlined_call_operand.hbm [shape: f32[128,128], index: 7, kind: output, shape index: {0}]
  %s8 = inlined_call_operand.hbm [shape: f32[5,32,128], index: 8, kind: output, shape index: {1}]
  %9 = xla_tuple %s7, %s8
  %s10 = sld [smem:[#allocation0]]
  $region46: #{tpu_custom_call.1} parent=0
    _
  %s12 = ssub.s32 1, %s10
  %s13 = scalar_select 0, %s12, %s10
  $region1: #{tpu_custom_call.1} parent=0
    #allocation2 [shape = 'u8[65536]{0}', space=vmem, size = 0x10000, scoped, tag = 'output window, operand 0, single buffered']
    #allocation3 [shape = 's32[1]{0}', space=sflag, size = 0x4, scoped, tag = 'scoped memory for tpu_custom_call.1']
    #allocation4 [shape = 'u8[81920]{0}', space=vmem, size = 0x14000, scoped, tag = 'output window, operand 1, single buffered']
    #allocation5 [shape = 's32[1]{0}', space=sflag, size = 0x4, scoped, tag = 'scoped memory for tpu_custom_call.1']
    %14 = vsyncpa [#allocation3], 0
    %15 = vsyncpa [#allocation5], 0
    // Predicated region
    $region2: #{tpu_custom_call.1} parent=1 // pred_check
      _
    $region3: #{tpu_custom_call.1} parent=1 // pred_check_branch
      %17 = sbr.rel (0) target = $region5
    $region4: #{tpu_custom_call.1} parent=1 // pred_region
      _
    $region5: #{tpu_custom_call.1} parent=1 // pred_fallthru
      _
    // Predicated region
    $region6: #{tpu_custom_call.1} parent=1 // pred_check
      _
    $region7: #{tpu_custom_call.1} parent=1 // pred_check_branch
      %19 = sbr.rel (0) target = $region9
    $region8: #{tpu_custom_call.1} parent=1 // pred_region
      _
    $region9: #{tpu_custom_call.1} parent=1 // pred_fallthru
      _
    // Predicated region
    $region10: #{tpu_custom_call.1} parent=1 // pred_check
      _
    $region11: #{tpu_custom_call.1} parent=1 // pred_check_branch
      %21 = sbr.rel (0) target = $region13
    $region12: #{tpu_custom_call.1} parent=1 // pred_region
      _
    $region13: #{tpu_custom_call.1} parent=1 // pred_fallthru
      _
    // Predicated region
    $region14: #{tpu_custom_call.1} parent=1 // pred_check
      _
    $region15: #{tpu_custom_call.1} parent=1 // pred_check_branch
      %23 = sbr.rel (0) target = $region17
    $region16: #{tpu_custom_call.1} parent=1 // pred_region
      _
    $region17: #{tpu_custom_call.1} parent=1 // pred_fallthru
      _
    // Predicated region
    $region18: #{tpu_custom_call.1} parent=1 // pred_check
      _
    $region19: #{tpu_custom_call.1} parent=1 // pred_check_branch
      %25 = sbr.rel (0) target = $region21
    $region20: #{tpu_custom_call.1} parent=1 // pred_region
      _
    $region21: #{tpu_custom_call.1} parent=1 // pred_fallthru
      _
    // Predicated region
    $region22: #{tpu_custom_call.1} parent=1 // pred_check
      _
    $region23: #{tpu_custom_call.1} parent=1 // pred_check_branch
      %27 = sbr.rel (0) target = $region25
    $region24: #{tpu_custom_call.1} parent=1 // pred_region
      _
    $region25: #{tpu_custom_call.1} parent=1 // pred_fallthru
      _
    // Predicated region
    $region26: #{tpu_custom_call.1} parent=1 // pred_check
      _
    $region27: #{tpu_custom_call.1} parent=1 // pred_check_branch
      %29 = sbr.rel (0) target = $region29
    $region28: #{tpu_custom_call.1} parent=1 // pred_region
      _
    $region29: #{tpu_custom_call.1} parent=1 // pred_fallthru
      _
    %v31 = vld [vmem:[%s1] sm:$0xff]
    %v32 = vld [vmem:[%s1 + $0x8] sm:$0xff]
    %v33 = vld [vmem:[%s1 + $0x10] sm:$0xff]
    %v34 = vld [vmem:[%s1 + $0x18] sm:$0xff]
    %v35 = vld [vmem:[%s1 + $0x20] sm:$0xff]
    %v36 = vld [vmem:[%s1 + $0x28] sm:$0xff]
    %v37 = vld [vmem:[%s1 + $0x30] sm:$0xff]
    %v38 = vld [vmem:[%s1 + $0x38] sm:$0xff]
    %v39 = vld [vmem:[%s1 + $0x40] sm:$0xff]
    %v40 = vld [vmem:[%s1 + $0x48] sm:$0xff]
    %v41 = vld [vmem:[%s1 + $0x50] sm:$0xff]
    %v42 = vld [vmem:[%s1 + $0x58] sm:$0xff]
    %v43 = vld [vmem:[%s1 + $0x60] sm:$0xff]
    %v44 = vld [vmem:[%s1 + $0x68] sm:$0xff]
    %v45 = vld [vmem:[%s1 + $0x70] sm:$0xff]
    %v46 = vld [vmem:[%s1 + $0x78] sm:$0xff]
    %v47 = vpack.c.bf16 %v32, %v31
    %v48 = vpack.c.bf16 %v34, %v33
    %v49 = vpack.c.bf16 %v36, %v35
    %v50 = vpack.c.bf16 %v38, %v37
    %v51 = vpack.c.bf16 %v40, %v39
    %v52 = vpack.c.bf16 %v42, %v41
    %v53 = vpack.c.bf16 %v44, %v43
    %v54 = vpack.c.bf16 %v46, %v45
    %v55 = vld [vmem:[%s2] sm:$0xf]
    %v56 = vld [vmem:[%s2 + $0x4] sm:$0xf]
    %v57 = vld [vmem:[%s2 + $0x8] sm:$0xf]
    %v58 = vld [vmem:[%s2 + $0xc] sm:$0xf]
    %v59 = vld [vmem:[%s0] sm:$0xff]
    %v60 = vld [vmem:[%s0 + $0x8] sm:$0xff]
    %v61 = vpack.c.bf16 %v60, %v59
    %v62 = vld [vmem:[%s3] sm:$0xff]
    %v63 = vld [vmem:[%s3 + $0x8] sm:$0xff]
    %v64 = vld [vmem:[%s3 + $0x10] sm:$0xff]
    %v65 = vld [vmem:[%s3 + $0x18] sm:$0xff]
    %67 = vset.pattern.permute.xlu0 0
    %68 = vperm.xlu0 %67, %v62
    %v69 = vpop.permute.xlu0 %68
    %72 = vset.pattern.permute.xlu0 0
    %73 = vperm.xlu0 %72, %v63
    %v74 = vpop.permute.xlu0 %73
    %77 = vset.pattern.permute.xlu0 0
    %78 = vperm.xlu0 %77, %v64
    %v79 = vpop.permute.xlu0 %78
    %82 = vset.pattern.permute.xlu0 0
    %83 = vperm.xlu0 %82, %v65
    %v84 = vpop.permute.xlu0 %83
    %v90 = vunpack.c.l.b16 %v55
    %v91 = vunpack.c.l.b16 %v56
    %v92 = vunpack.c.l.b16 %v57
    %v93 = vunpack.c.l.b16 %v58
    %v94 = vpack.c.b16 %v91, %v90
    %v95 = vpack.c.b16 %v93, %v92
    %vm96 = vcmask 130048
    %v98 = vsel %vm96, %v94, 0
    %v101 = vsel %vm96, %v95, 0
    %103 = vmatprep.subr.bf16.mxu0 0
    %104 = vmatpush1.bf16.msra.mxu0 %v61
    %105 = vmatprep.subr.bf16.mxu0 0
    %106 = vmatpush1.bf16.msra.mxu0 0
    %107 = vmatprep.subr.bf16.mxu0 0
    %108 = vmatpush1.bf16.msra.mxu0 0
    %109 = vmatprep.subr.bf16.mxu0 0
    %110 = vmatpush1.bf16.msra.mxu0 0
    %111 = vmatprep.subr.bf16.mxu0 0
    %112 = vmatpush1.bf16.msra.mxu0 0
    %113 = vmatprep.subr.bf16.mxu0 0
    %114 = vmatpush1.bf16.msra.mxu0 0
    %115 = vmatprep.subr.bf16.mxu0 0
    %116 = vmatpush1.bf16.msra.mxu0 0
    %117 = vmatprep.subr.bf16.mxu0 0
    %118 = vmatpush1.bf16.msra.mxu0 0
    %119 = vmatprep.subr.bf16.mxu0 0
    %120 = vmatpush1.bf16.msra.mxu0 0
    %121 = vmatprep.subr.bf16.mxu0 0
    %122 = vmatpush1.bf16.msra.mxu0 0
    %123 = vmatprep.subr.bf16.mxu0 0
    %124 = vmatpush1.bf16.msra.mxu0 0
    %125 = vmatprep.subr.bf16.mxu0 0
    %126 = vmatpush1.bf16.msra.mxu0 0
    %127 = vmatprep.subr.bf16.mxu0 0
    %128 = vmatpush1.bf16.msra.mxu0 0
    %129 = vmatprep.subr.bf16.mxu0 0
    %130 = vmatpush1.bf16.msra.mxu0 0
    %131 = vmatprep.subr.bf16.mxu0 0
    %132 = vmatpush1.bf16.msra.mxu0 0
    %133 = vmatprep.subr.bf16.mxu0 0
    %134 = vmatpush1.bf16.msra.mxu0 0
    %135 = vmatprep.mubr.bf16.mxu0 0
    %136 = vmatmul.mubr.bf16.gmra.mrb[0].mxu0 %v98
    %v137 = vpop.f32.mrb[0].mxu0
    %v138 = vadd.f32 %v69, %v137
    %v139 = vpop.f32.mrb[0].mxu0
    %v140 = vpop.f32.mrb[0].mxu0
    %v141 = vadd.f32 %v74, %v140
    %v142 = vpop.f32.mrb[0].mxu0
    %143 = vmatprep.mubr.bf16.mxu0 0
    %144 = vmatmul.mubr.bf16.gmra.mrb[0].mxu0 %v101
    %v145 = vpop.f32.mrb[0].mxu0
    %v146 = vadd.f32 %v79, %v145
    %v147 = vpop.f32.mrb[0].mxu0
    %v148 = vpop.f32.mrb[0].mxu0
    %v149 = vadd.f32 %v84, %v148
    %v150 = vpop.f32.mrb[0].mxu0
    %151 = vdwg.mxu0
    %v152 = vmax.f32 %v138, 0.0
    %v153 = vmax.f32 %v141, 0.0
    %v154 = vmax.f32 %v146, 0.0
    %v155 = vmax.f32 %v149, 0.0
    %v156 = vmul.f32 %v152, 0.1
    %v157 = vmul.f32 %v153, 0.1
    %v158 = vmul.f32 %v154, 0.1
    %v159 = vmul.f32 %v155, 0.1
    %160 = vst [vmem:[#allocation4] sm:$0xff] %v152
    %161 = vst [vmem:[#allocation4 + $0x8] sm:$0xff] %v153
    %162 = vst [vmem:[#allocation4 + $0x10] sm:$0xff] %v154
    %163 = vst [vmem:[#allocation4 + $0x18] sm:$0xff] %v155
    %v164 = vpack.c.bf16 %v153, %v152
    %v165 = vpack.c.bf16 %v155, %v154
    %166 = vmatprep.subr.bf16.mxu0 0
    %167 = vmatpush1.bf16.msra.mxu0 %v47
    %168 = vmatprep.subr.bf16.mxu0 0
    %169 = vmatpush1.bf16.msra.mxu0 %v48
    %170 = vmatprep.subr.bf16.mxu0 0
    %171 = vmatpush1.bf16.msra.mxu0 %v49
    %172 = vmatprep.subr.bf16.mxu0 0
    %173 = vmatpush1.bf16.msra.mxu0 %v50
    %174 = vmatprep.subr.bf16.mxu0 0
    %175 = vmatpush1.bf16.msra.mxu0 %v51
    %176 = vmatprep.subr.bf16.mxu0 0
    %177 = vmatpush1.bf16.msra.mxu0 %v52
    %178 = vmatprep.subr.bf16.mxu0 0
    %179 = vmatpush1.bf16.msra.mxu0 %v53
    %180 = vmatprep.subr.bf16.mxu0 0
    %181 = vmatpush1.bf16.msra.mxu0 %v54
    %182 = vmatprep.subr.bf16.mxu0 0
    %183 = vmatpush1.bf16.msra.mxu0 0
    %184 = vmatprep.subr.bf16.mxu0 0
    %185 = vmatpush1.bf16.msra.mxu0 0
    %186 = vmatprep.subr.bf16.mxu0 0
    %187 = vmatpush1.bf16.msra.mxu0 0
    %188 = vmatprep.subr.bf16.mxu0 0
    %189 = vmatpush1.bf16.msra.mxu0 0
    %190 = vmatprep.subr.bf16.mxu0 0
    %191 = vmatpush1.bf16.msra.mxu0 0
    %192 = vmatprep.subr.bf16.mxu0 0
    %193 = vmatpush1.bf16.msra.mxu0 0
    %194 = vmatprep.subr.bf16.mxu0 0
    %195 = vmatpush1.bf16.msra.mxu0 0
    %196 = vmatprep.subr.bf16.mxu0 0
    %197 = vmatpush1.bf16.msra.mxu0 0
    %198 = vmatprep.mubr.bf16.mxu0 0
    %199 = vmatmul.mubr.bf16.gmra.mrb[0].mxu0 %v164
    %v200 = vpop.f32.mrb[0].mxu0
    %v201 = vadd.f32 0.0, %v200
    %v202 = vpop.f32.mrb[0].mxu0
    %v203 = vpop.f32.mrb[0].mxu0
    %v204 = vadd.f32 0.0, %v203
    %v205 = vpop.f32.mrb[0].mxu0
    %206 = vmatprep.mubr.bf16.mxu0 0
    %207 = vmatmul.mubr.bf16.gmra.mrb[0].mxu0 %v165
    %v208 = vpop.f32.mrb[0].mxu0
    %v209 = vadd.f32 0.0, %v208
    %v210 = vpop.f32.mrb[0].mxu0
    %v211 = vpop.f32.mrb[0].mxu0
    %v212 = vadd.f32 0.0, %v211
    %v213 = vpop.f32.mrb[0].mxu0
    %214 = vdwg.mxu0
    %v215 = vmul.f32 %v201, 0.9
    %v216 = vmul.f32 %v204, 0.9
    %v217 = vmul.f32 %v209, 0.9
    %v218 = vmul.f32 %v212, 0.9
    %v219 = vadd.f32 %v215, %v156
    %v220 = vadd.f32 %v216, %v157
    %v221 = vadd.f32 %v217, %v158
    %v222 = vadd.f32 %v218, %v159
    %v223 = vld [vmem:[%s4] sm:$0xf]
    %v224 = vld [vmem:[%s4 + $0x4] sm:$0xf]
    %v225 = vld [vmem:[%s4 + $0x8] sm:$0xf]
    %v226 = vld [vmem:[%s4 + $0xc] sm:$0xf]
    %v227 = vpack.c.bf16 %v220, %v219
    %v228 = vpack.c.bf16 %v222, %v221
    %v233 = vunpack.c.l.b16 %v223
    %v234 = vunpack.c.l.b16 %v224
    %v235 = vunpack.c.l.b16 %v225
    %v236 = vunpack.c.l.b16 %v226
    %v237 = vpack.c.b16 %v234, %v233
    %v238 = vpack.c.b16 %v236, %v235
    %vm239 = vcmask 261120
    %v241 = vsel %vm239, %v237, 0
    %v244 = vsel %vm239, %v238, 0
    %246 = vmatprep.subr.bf16.mxu0 0
    %247 = vmatpush1.bf16.msra.mxu0 %v227
    %248 = vmatprep.subr.bf16.mxu0 0
    %249 = vmatpush1.bf16.msra.mxu0 %v228
    %250 = vmatprep.subr.bf16.mxu0 0
    %251 = vmatpush1.bf16.msra.mxu0 0
    %252 = vmatprep.subr.bf16.mxu0 0
    %253 = vmatpush1.bf16.msra.mxu0 0
    %254 = vmatprep.subr.bf16.mxu0 0
    %255 = vmatpush1.bf16.msra.mxu0 0
    %256 = vmatprep.subr.bf16.mxu0 0
    %257 = vmatpush1.bf16.msra.mxu0 0
    %258 = vmatprep.subr.bf16.mxu0 0
    %259 = vmatpush1.bf16.msra.mxu0 0
    %260 = vmatprep.subr.bf16.mxu0 0
    %261 = vmatpush1.bf16.msra.mxu0 0
    %262 = vmatprep.subr.bf16.mxu0 0
    %263 = vmatpush1.bf16.msra.mxu0 0
    %264 = vmatprep.subr.bf16.mxu0 0
    %265 = vmatpush1.bf16.msra.mxu0 0
    %266 = vmatprep.subr.bf16.mxu0 0
    %267 = vmatpush1.bf16.msra.mxu0 0
    %268 = vmatprep.subr.bf16.mxu0 0
    %269 = vmatpush1.bf16.msra.mxu0 0
    %270 = vmatprep.subr.bf16.mxu0 0
    %271 = vmatpush1.bf16.msra.mxu0 0
    %272 = vmatprep.subr.bf16.mxu0 0
    %273 = vmatpush1.bf16.msra.mxu0 0
    %274 = vmatprep.subr.bf16.mxu0 0
    %275 = vmatpush1.bf16.msra.mxu0 0
    %276 = vmatprep.subr.bf16.mxu0 0
    %277 = vmatpush1.bf16.msra.mxu0 0
    %278 = vmatprep.mubr.bf16.mxu0 0
    %279 = vmatmul.mubr.bf16.gmra.mrb[0].mxu0 %v241
    %v280 = vpop.f32.mrb[0].mxu0
    %v281 = vadd.f32 0.0, %v280
    %v282 = vpop.f32.mrb[0].mxu0
    %v283 = vpop.f32.mrb[0].mxu0
    %v284 = vadd.f32 0.0, %v283
    %v285 = vpop.f32.mrb[0].mxu0
    %286 = vmatprep.mubr.bf16.mxu0 0
    %287 = vmatmul.mubr.bf16.gmra.mrb[0].mxu0 %v244
    %v288 = vpop.f32.mrb[0].mxu0
    %v289 = vadd.f32 0.0, %v288
    %v290 = vpop.f32.mrb[0].mxu0
    %v291 = vpop.f32.mrb[0].mxu0
    %v292 = vadd.f32 0.0, %v291
    %v293 = vpop.f32.mrb[0].mxu0
    %294 = vdwg.mxu0
    %v295 = vmax.f32 %v281, 0.0
    %v296 = vmax.f32 %v284, 0.0
    %v297 = vmax.f32 %v289, 0.0
    %v298 = vmax.f32 %v292, 0.0
    %s299 = scalar_lea.vmem [#allocation4], 32
    %300 = vst [vmem:[%s299] sm:$0xff] %v295
    %301 = vst [vmem:[%s299 + $0x8] sm:$0xff] %v296
    %302 = vst [vmem:[%s299 + $0x10] sm:$0xff] %v297
    %303 = vst [vmem:[%s299 + $0x18] sm:$0xff] %v298
    %v304 = vpack.c.bf16 %v296, %v295
    %v305 = vpack.c.bf16 %v298, %v297
    %306 = vmatprep.subr.bf16.mxu0 0
    %307 = vmatpush1.bf16.msra.mxu0 %v47
    %308 = vmatprep.subr.bf16.mxu0 0
    %309 = vmatpush1.bf16.msra.mxu0 %v48
    %310 = vmatprep.subr.bf16.mxu0 0
    %311 = vmatpush1.bf16.msra.mxu0 %v49
    %312 = vmatprep.subr.bf16.mxu0 0
    %313 = vmatpush1.bf16.msra.mxu0 %v50
    %314 = vmatprep.subr.bf16.mxu0 0
    %315 = vmatpush1.bf16.msra.mxu0 %v51
    %316 = vmatprep.subr.bf16.mxu0 0
    %317 = vmatpush1.bf16.msra.mxu0 %v52
    %318 = vmatprep.subr.bf16.mxu0 0
    %319 = vmatpush1.bf16.msra.mxu0 %v53
    %320 = vmatprep.subr.bf16.mxu0 0
    %321 = vmatpush1.bf16.msra.mxu0 %v54
    %322 = vmatprep.subr.bf16.mxu0 0
    %323 = vmatpush1.bf16.msra.mxu0 0
    %324 = vmatprep.subr.bf16.mxu0 0
    %325 = vmatpush1.bf16.msra.mxu0 0
    %326 = vmatprep.subr.bf16.mxu0 0
    %327 = vmatpush1.bf16.msra.mxu0 0
    %328 = vmatprep.subr.bf16.mxu0 0
    %329 = vmatpush1.bf16.msra.mxu0 0
    %330 = vmatprep.subr.bf16.mxu0 0
    %331 = vmatpush1.bf16.msra.mxu0 0
    %332 = vmatprep.subr.bf16.mxu0 0
    %333 = vmatpush1.bf16.msra.mxu0 0
    %334 = vmatprep.subr.bf16.mxu0 0
    %335 = vmatpush1.bf16.msra.mxu0 0
    %336 = vmatprep.subr.bf16.mxu0 0
    %337 = vmatpush1.bf16.msra.mxu0 0
    %338 = vmatprep.mubr.bf16.mxu0 0
    %339 = vmatmul.mubr.bf16.gmra.mrb[0].mxu0 %v304
    %v340 = vpop.f32.mrb[0].mxu0
    %v341 = vadd.f32 0.0, %v340
    %v342 = vpop.f32.mrb[0].mxu0
    %v343 = vpop.f32.mrb[0].mxu0
    %v344 = vadd.f32 0.0, %v343
    %v345 = vpop.f32.mrb[0].mxu0
    %346 = vmatprep.mubr.bf16.mxu0 0
    %347 = vmatmul.mubr.bf16.gmra.mrb[0].mxu0 %v305
    %v348 = vpop.f32.mrb[0].mxu0
    %v349 = vadd.f32 0.0, %v348
    %v350 = vpop.f32.mrb[0].mxu0
    %v351 = vpop.f32.mrb[0].mxu0
    %v352 = vadd.f32 0.0, %v351
    %v353 = vpop.f32.mrb[0].mxu0
    %354 = vdwg.mxu0
    %v355 = vmul.f32 %v341, 0.9
    %v356 = vmul.f32 %v344, 0.9
    %v357 = vmul.f32 %v349, 0.9
    %v358 = vmul.f32 %v352, 0.9
    %v359 = vadd.f32 %v355, %v156
    %v360 = vadd.f32 %v356, %v157
    %v361 = vadd.f32 %v357, %v158
    %v362 = vadd.f32 %v358, %v159
    %s363 = scalar_lea.vmem %s4, 16
    %v364 = vld [vmem:[%s363] sm:$0xf]
    %v365 = vld [vmem:[%s363 + $0x4] sm:$0xf]
    %v366 = vld [vmem:[%s363 + $0x8] sm:$0xf]
    %v367 = vld [vmem:[%s363 + $0xc] sm:$0xf]
    %v368 = vpack.c.bf16 %v360, %v359
    %v369 = vpack.c.bf16 %v362, %v361
    %v374 = vunpack.c.l.b16 %v364
    %v375 = vunpack.c.l.b16 %v365
    %v376 = vunpack.c.l.b16 %v366
    %v377 = vunpack.c.l.b16 %v367
    %v378 = vpack.c.b16 %v375, %v374
    %v379 = vpack.c.b16 %v377, %v376
    %v381 = vsel %vm239, %v378, 0
    %v384 = vsel %vm239, %v379, 0
    %386 = vmatprep.subr.bf16.mxu0 0
    %387 = vmatpush1.bf16.msra.mxu0 %v368
    %388 = vmatprep.subr.bf16.mxu0 0
    %389 = vmatpush1.bf16.msra.mxu0 %v369
    %390 = vmatprep.subr.bf16.mxu0 0
    %391 = vmatpush1.bf16.msra.mxu0 0
    %392 = vmatprep.subr.bf16.mxu0 0
    %393 = vmatpush1.bf16.msra.mxu0 0
    %394 = vmatprep.subr.bf16.mxu0 0
    %395 = vmatpush1.bf16.msra.mxu0 0
    %396 = vmatprep.subr.bf16.mxu0 0
    %397 = vmatpush1.bf16.msra.mxu0 0
    %398 = vmatprep.subr.bf16.mxu0 0
    %399 = vmatpush1.bf16.msra.mxu0 0
    %400 = vmatprep.subr.bf16.mxu0 0
    %401 = vmatpush1.bf16.msra.mxu0 0
    %402 = vmatprep.subr.bf16.mxu0 0
    %403 = vmatpush1.bf16.msra.mxu0 0
    %404 = vmatprep.subr.bf16.mxu0 0
    %405 = vmatpush1.bf16.msra.mxu0 0
    %406 = vmatprep.subr.bf16.mxu0 0
    %407 = vmatpush1.bf16.msra.mxu0 0
    %408 = vmatprep.subr.bf16.mxu0 0
    %409 = vmatpush1.bf16.msra.mxu0 0
    %410 = vmatprep.subr.bf16.mxu0 0
    %411 = vmatpush1.bf16.msra.mxu0 0
    %412 = vmatprep.subr.bf16.mxu0 0
    %413 = vmatpush1.bf16.msra.mxu0 0
    %414 = vmatprep.subr.bf16.mxu0 0
    %415 = vmatpush1.bf16.msra.mxu0 0
    %416 = vmatprep.subr.bf16.mxu0 0
    %417 = vmatpush1.bf16.msra.mxu0 0
    %418 = vmatprep.mubr.bf16.mxu0 0
    %419 = vmatmul.mubr.bf16.gmra.mrb[0].mxu0 %v381
    %v420 = vpop.f32.mrb[0].mxu0
    %v421 = vadd.f32 0.0, %v420
    %v422 = vpop.f32.mrb[0].mxu0
    %v423 = vpop.f32.mrb[0].mxu0
    %v424 = vadd.f32 0.0, %v423
    %v425 = vpop.f32.mrb[0].mxu0
    %426 = vmatprep.mubr.bf16.mxu0 0
    %427 = vmatmul.mubr.bf16.gmra.mrb[0].mxu0 %v384
    %v428 = vpop.f32.mrb[0].mxu0
    %v429 = vadd.f32 0.0, %v428
    %v430 = vpop.f32.mrb[0].mxu0
    %v431 = vpop.f32.mrb[0].mxu0
    %v432 = vadd.f32 0.0, %v431
    %v433 = vpop.f32.mrb[0].mxu0
    %434 = vdwg.mxu0
    %v435 = vmax.f32 %v421, 0.0
    %v436 = vmax.f32 %v424, 0.0
    %v437 = vmax.f32 %v429, 0.0
    %v438 = vmax.f32 %v432, 0.0
    %s439 = scalar_lea.vmem [#allocation4], 64
    %440 = vst [vmem:[%s439] sm:$0xff] %v435
    %441 = vst [vmem:[%s439 + $0x8] sm:$0xff] %v436
    %442 = vst [vmem:[%s439 + $0x10] sm:$0xff] %v437
    %443 = vst [vmem:[%s439 + $0x18] sm:$0xff] %v438
    %v444 = vpack.c.bf16 %v436, %v435
    %v445 = vpack.c.bf16 %v438, %v437
    %446 = vmatprep.subr.bf16.mxu0 0
    %447 = vmatpush1.bf16.msra.mxu0 %v47
    %448 = vmatprep.subr.bf16.mxu0 0
    %449 = vmatpush1.bf16.msra.mxu0 %v48
    %450 = vmatprep.subr.bf16.mxu0 0
    %451 = vmatpush1.bf16.msra.mxu0 %v49
    %452 = vmatprep.subr.bf16.mxu0 0
    %453 = vmatpush1.bf16.msra.mxu0 %v50
    %454 = vmatprep.subr.bf16.mxu0 0
    %455 = vmatpush1.bf16.msra.mxu0 %v51
    %456 = vmatprep.subr.bf16.mxu0 0
    %457 = vmatpush1.bf16.msra.mxu0 %v52
    %458 = vmatprep.subr.bf16.mxu0 0
    %459 = vmatpush1.bf16.msra.mxu0 %v53
    %460 = vmatprep.subr.bf16.mxu0 0
    %461 = vmatpush1.bf16.msra.mxu0 %v54
    %462 = vmatprep.subr.bf16.mxu0 0
    %463 = vmatpush1.bf16.msra.mxu0 0
    %464 = vmatprep.subr.bf16.mxu0 0
    %465 = vmatpush1.bf16.msra.mxu0 0
    %466 = vmatprep.subr.bf16.mxu0 0
    %467 = vmatpush1.bf16.msra.mxu0 0
    %468 = vmatprep.subr.bf16.mxu0 0
    %469 = vmatpush1.bf16.msra.mxu0 0
    %470 = vmatprep.subr.bf16.mxu0 0
    %471 = vmatpush1.bf16.msra.mxu0 0
    %472 = vmatprep.subr.bf16.mxu0 0
    %473 = vmatpush1.bf16.msra.mxu0 0
    %474 = vmatprep.subr.bf16.mxu0 0
    %475 = vmatpush1.bf16.msra.mxu0 0
    %476 = vmatprep.subr.bf16.mxu0 0
    %477 = vmatpush1.bf16.msra.mxu0 0
    %478 = vmatprep.mubr.bf16.mxu0 0
    %479 = vmatmul.mubr.bf16.gmra.mrb[0].mxu0 %v444
    %v480 = vpop.f32.mrb[0].mxu0
    %v481 = vadd.f32 0.0, %v480
    %v482 = vpop.f32.mrb[0].mxu0
    %v483 = vpop.f32.mrb[0].mxu0
    %v484 = vadd.f32 0.0, %v483
    %v485 = vpop.f32.mrb[0].mxu0
    %486 = vmatprep.mubr.bf16.mxu0 0
    %487 = vmatmul.mubr.bf16.gmra.mrb[0].mxu0 %v445
    %v488 = vpop.f32.mrb[0].mxu0
    %v489 = vadd.f32 0.0, %v488
    %v490 = vpop.f32.mrb[0].mxu0
    %v491 = vpop.f32.mrb[0].mxu0
    %v492 = vadd.f32 0.0, %v491
    %v493 = vpop.f32.mrb[0].mxu0
    %494 = vdwg.mxu0
    %v495 = vmul.f32 %v481, 0.9
    %v496 = vmul.f32 %v484, 0.9
    %v497 = vmul.f32 %v489, 0.9
    %v498 = vmul.f32 %v492, 0.9
    %v499 = vadd.f32 %v495, %v156
    %v500 = vadd.f32 %v496, %v157
    %v501 = vadd.f32 %v497, %v158
    %v502 = vadd.f32 %v498, %v159
    %s503 = scalar_lea.vmem %s4, 32
    %v504 = vld [vmem:[%s503] sm:$0xf]
    %v505 = vld [vmem:[%s503 + $0x4] sm:$0xf]
    %v506 = vld [vmem:[%s503 + $0x8] sm:$0xf]
    %v507 = vld [vmem:[%s503 + $0xc] sm:$0xf]
    %v508 = vpack.c.bf16 %v500, %v499
    %v509 = vpack.c.bf16 %v502, %v501
    %v514 = vunpack.c.l.b16 %v504
    %v515 = vunpack.c.l.b16 %v505
    %v516 = vunpack.c.l.b16 %v506
    %v517 = vunpack.c.l.b16 %v507
    %v518 = vpack.c.b16 %v515, %v514
    %v519 = vpack.c.b16 %v517, %v516
    %v521 = vsel %vm239, %v518, 0
    %v524 = vsel %vm239, %v519, 0
    %526 = vmatprep.subr.bf16.mxu0 0
    %527 = vmatpush1.bf16.msra.mxu0 %v508
    %528 = vmatprep.subr.bf16.mxu0 0
    %529 = vmatpush1.bf16.msra.mxu0 %v509
    %530 = vmatprep.subr.bf16.mxu0 0
    %531 = vmatpush1.bf16.msra.mxu0 0
    %532 = vmatprep.subr.bf16.mxu0 0
    %533 = vmatpush1.bf16.msra.mxu0 0
    %534 = vmatprep.subr.bf16.mxu0 0
    %535 = vmatpush1.bf16.msra.mxu0 0
    %536 = vmatprep.subr.bf16.mxu0 0
    %537 = vmatpush1.bf16.msra.mxu0 0
    %538 = vmatprep.subr.bf16.mxu0 0
    %539 = vmatpush1.bf16.msra.mxu0 0
    %540 = vmatprep.subr.bf16.mxu0 0
    %541 = vmatpush1.bf16.msra.mxu0 0
    %542 = vmatprep.subr.bf16.mxu0 0
    %543 = vmatpush1.bf16.msra.mxu0 0
    %544 = vmatprep.subr.bf16.mxu0 0
    %545 = vmatpush1.bf16.msra.mxu0 0
    %546 = vmatprep.subr.bf16.mxu0 0
    %547 = vmatpush1.bf16.msra.mxu0 0
    %548 = vmatprep.subr.bf16.mxu0 0
    %549 = vmatpush1.bf16.msra.mxu0 0
    %550 = vmatprep.subr.bf16.mxu0 0
    %551 = vmatpush1.bf16.msra.mxu0 0
    %552 = vmatprep.subr.bf16.mxu0 0
    %553 = vmatpush1.bf16.msra.mxu0 0
    %554 = vmatprep.subr.bf16.mxu0 0
    %555 = vmatpush1.bf16.msra.mxu0 0
    %556 = vmatprep.subr.bf16.mxu0 0
    %557 = vmatpush1.bf16.msra.mxu0 0
    %558 = vmatprep.mubr.bf16.mxu0 0
    %559 = vmatmul.mubr.bf16.gmra.mrb[0].mxu0 %v521
    %v560 = vpop.f32.mrb[0].mxu0
    %v561 = vadd.f32 0.0, %v560
    %v562 = vpop.f32.mrb[0].mxu0
    %v563 = vpop.f32.mrb[0].mxu0
    %v564 = vadd.f32 0.0, %v563
    %v565 = vpop.f32.mrb[0].mxu0
    %566 = vmatprep.mubr.bf16.mxu0 0
    %567 = vmatmul.mubr.bf16.gmra.mrb[0].mxu0 %v524
    %v568 = vpop.f32.mrb[0].mxu0
    %v569 = vadd.f32 0.0, %v568
    %v570 = vpop.f32.mrb[0].mxu0
    %v571 = vpop.f32.mrb[0].mxu0
    %v572 = vadd.f32 0.0, %v571
    %v573 = vpop.f32.mrb[0].mxu0
    %574 = vdwg.mxu0
    %v575 = vmax.f32 %v561, 0.0
    %v576 = vmax.f32 %v564, 0.0
    %v577 = vmax.f32 %v569, 0.0
    %v578 = vmax.f32 %v572, 0.0
    %s579 = scalar_lea.vmem [#allocation4], 96
    %580 = vst [vmem:[%s579] sm:$0xff] %v575
    %581 = vst [vmem:[%s579 + $0x8] sm:$0xff] %v576
    %582 = vst [vmem:[%s579 + $0x10] sm:$0xff] %v577
    %583 = vst [vmem:[%s579 + $0x18] sm:$0xff] %v578
    %v584 = vpack.c.bf16 %v576, %v575
    %v585 = vpack.c.bf16 %v578, %v577
    %586 = vmatprep.subr.bf16.mxu0 0
    %587 = vmatpush1.bf16.msra.mxu0 %v47
    %588 = vmatprep.subr.bf16.mxu0 0
    %589 = vmatpush1.bf16.msra.mxu0 %v48
    %590 = vmatprep.subr.bf16.mxu0 0
    %591 = vmatpush1.bf16.msra.mxu0 %v49
    %592 = vmatprep.subr.bf16.mxu0 0
    %593 = vmatpush1.bf16.msra.mxu0 %v50
    %594 = vmatprep.subr.bf16.mxu0 0
    %595 = vmatpush1.bf16.msra.mxu0 %v51
    %596 = vmatprep.subr.bf16.mxu0 0
    %597 = vmatpush1.bf16.msra.mxu0 %v52
    %598 = vmatprep.subr.bf16.mxu0 0
    %599 = vmatpush1.bf16.msra.mxu0 %v53
    %600 = vmatprep.subr.bf16.mxu0 0
    %601 = vmatpush1.bf16.msra.mxu0 %v54
    %602 = vmatprep.subr.bf16.mxu0 0
    %603 = vmatpush1.bf16.msra.mxu0 0
    %604 = vmatprep.subr.bf16.mxu0 0
    %605 = vmatpush1.bf16.msra.mxu0 0
    %606 = vmatprep.subr.bf16.mxu0 0
    %607 = vmatpush1.bf16.msra.mxu0 0
    %608 = vmatprep.subr.bf16.mxu0 0
    %609 = vmatpush1.bf16.msra.mxu0 0
    %610 = vmatprep.subr.bf16.mxu0 0
    %611 = vmatpush1.bf16.msra.mxu0 0
    %612 = vmatprep.subr.bf16.mxu0 0
    %613 = vmatpush1.bf16.msra.mxu0 0
    %614 = vmatprep.subr.bf16.mxu0 0
    %615 = vmatpush1.bf16.msra.mxu0 0
    %616 = vmatprep.subr.bf16.mxu0 0
    %617 = vmatpush1.bf16.msra.mxu0 0
    %618 = vmatprep.mubr.bf16.mxu0 0
    %619 = vmatmul.mubr.bf16.gmra.mrb[0].mxu0 %v584
    %v620 = vpop.f32.mrb[0].mxu0
    %v621 = vadd.f32 0.0, %v620
    %v622 = vpop.f32.mrb[0].mxu0
    %v623 = vpop.f32.mrb[0].mxu0
    %v624 = vadd.f32 0.0, %v623
    %v625 = vpop.f32.mrb[0].mxu0
    %626 = vmatprep.mubr.bf16.mxu0 0
    %627 = vmatmul.mubr.bf16.gmra.mrb[0].mxu0 %v585
    %v628 = vpop.f32.mrb[0].mxu0
    %v629 = vadd.f32 0.0, %v628
    %v630 = vpop.f32.mrb[0].mxu0
    %v631 = vpop.f32.mrb[0].mxu0
    %v632 = vadd.f32 0.0, %v631
    %v633 = vpop.f32.mrb[0].mxu0
    %634 = vdwg.mxu0
    %v635 = vmul.f32 %v621, 0.9
    %v636 = vmul.f32 %v624, 0.9
    %v637 = vmul.f32 %v629, 0.9
    %v638 = vmul.f32 %v632, 0.9
    %v639 = vadd.f32 %v635, %v156
    %v640 = vadd.f32 %v636, %v157
    %v641 = vadd.f32 %v637, %v158
    %v642 = vadd.f32 %v638, %v159
    %s643 = scalar_lea.vmem %s4, 48
    %v644 = vld [vmem:[%s643] sm:$0xf]
    %v645 = vld [vmem:[%s643 + $0x4] sm:$0xf]
    %v646 = vld [vmem:[%s643 + $0x8] sm:$0xf]
    %v647 = vld [vmem:[%s643 + $0xc] sm:$0xf]
    %v648 = vpack.c.bf16 %v640, %v639
    %v649 = vpack.c.bf16 %v642, %v641
    %v654 = vunpack.c.l.b16 %v644
    %v655 = vunpack.c.l.b16 %v645
    %v656 = vunpack.c.l.b16 %v646
    %v657 = vunpack.c.l.b16 %v647
    %v658 = vpack.c.b16 %v655, %v654
    %v659 = vpack.c.b16 %v657, %v656
    %v661 = vsel %vm239, %v658, 0
    %v664 = vsel %vm239, %v659, 0
    %666 = vmatprep.subr.bf16.mxu0 0
    %667 = vmatpush1.bf16.msra.mxu0 %v648
    %668 = vmatprep.subr.bf16.mxu0 0
    %669 = vmatpush1.bf16.msra.mxu0 %v649
    %670 = vmatprep.subr.bf16.mxu0 0
    %671 = vmatpush1.bf16.msra.mxu0 0
    %672 = vmatprep.subr.bf16.mxu0 0
    %673 = vmatpush1.bf16.msra.mxu0 0
    %674 = vmatprep.subr.bf16.mxu0 0
    %675 = vmatpush1.bf16.msra.mxu0 0
    %676 = vmatprep.subr.bf16.mxu0 0
    %677 = vmatpush1.bf16.msra.mxu0 0
    %678 = vmatprep.subr.bf16.mxu0 0
    %679 = vmatpush1.bf16.msra.mxu0 0
    %680 = vmatprep.subr.bf16.mxu0 0
    %681 = vmatpush1.bf16.msra.mxu0 0
    %682 = vmatprep.subr.bf16.mxu0 0
    %683 = vmatpush1.bf16.msra.mxu0 0
    %684 = vmatprep.subr.bf16.mxu0 0
    %685 = vmatpush1.bf16.msra.mxu0 0
    %686 = vmatprep.subr.bf16.mxu0 0
    %687 = vmatpush1.bf16.msra.mxu0 0
    %688 = vmatprep.subr.bf16.mxu0 0
    %689 = vmatpush1.bf16.msra.mxu0 0
    %690 = vmatprep.subr.bf16.mxu0 0
    %691 = vmatpush1.bf16.msra.mxu0 0
    %692 = vmatprep.subr.bf16.mxu0 0
    %693 = vmatpush1.bf16.msra.mxu0 0
    %694 = vmatprep.subr.bf16.mxu0 0
    %695 = vmatpush1.bf16.msra.mxu0 0
    %696 = vmatprep.subr.bf16.mxu0 0
    %697 = vmatpush1.bf16.msra.mxu0 0
    %698 = vmatprep.mubr.bf16.mxu0 0
    %699 = vmatmul.mubr.bf16.gmra.mrb[0].mxu0 %v661
    %v700 = vpop.f32.mrb[0].mxu0
    %v701 = vadd.f32 0.0, %v700
    %v702 = vpop.f32.mrb[0].mxu0
    %v703 = vpop.f32.mrb[0].mxu0
    %v704 = vadd.f32 0.0, %v703
    %v705 = vpop.f32.mrb[0].mxu0
    %706 = vmatprep.mubr.bf16.mxu0 0
    %707 = vmatmul.mubr.bf16.gmra.mrb[0].mxu0 %v664
    %v708 = vpop.f32.mrb[0].mxu0
    %v709 = vadd.f32 0.0, %v708
    %v710 = vpop.f32.mrb[0].mxu0
    %v711 = vpop.f32.mrb[0].mxu0
    %v712 = vadd.f32 0.0, %v711
    %v713 = vpop.f32.mrb[0].mxu0
    %714 = vdwg.mxu0
    %v715 = vmax.f32 %v701, 0.0
    %v716 = vmax.f32 %v704, 0.0
    %v717 = vmax.f32 %v709, 0.0
    %v718 = vmax.f32 %v712, 0.0
    %s719 = scalar_lea.vmem [#allocation4], 128
    %720 = vst [vmem:[%s719] sm:$0xff] %v715
    %721 = vst [vmem:[%s719 + $0x8] sm:$0xff] %v716
    %722 = vst [vmem:[%s719 + $0x10] sm:$0xff] %v717
    %723 = vst [vmem:[%s719 + $0x18] sm:$0xff] %v718
    %v724 = vld [vmem:[%s5] sm:$0xf]
    %v725 = vld [vmem:[%s5 + $0x4] sm:$0xf]
    %v726 = vld [vmem:[%s5 + $0x8] sm:$0xf]
    %v727 = vld [vmem:[%s5 + $0xc] sm:$0xf]
    %v728 = vld [vmem:[%s5 + $0x10] sm:$0xf]
    %v729 = vld [vmem:[%s5 + $0x14] sm:$0xf]
    %v730 = vld [vmem:[%s5 + $0x18] sm:$0xf]
    %v731 = vld [vmem:[%s5 + $0x1c] sm:$0xf]
    %v732 = vld [vmem:[%s5 + $0x20] sm:$0xf]
    %v733 = vld [vmem:[%s5 + $0x24] sm:$0xf]
    %v734 = vld [vmem:[%s5 + $0x28] sm:$0xf]
    %v735 = vld [vmem:[%s5 + $0x2c] sm:$0xf]
    %v736 = vld [vmem:[%s5 + $0x30] sm:$0xf]
    %v737 = vld [vmem:[%s5 + $0x34] sm:$0xf]
    %v738 = vld [vmem:[%s5 + $0x38] sm:$0xf]
    %v739 = vld [vmem:[%s5 + $0x3c] sm:$0xf]
    %v740 = vpack.c.bf16 %v716, %v715
    %v741 = vpack.c.bf16 %v718, %v717
    %v742 = vld [vmem:[%s6] sm:$0xff]
    %v743 = vld [vmem:[%s6 + $0x8] sm:$0xff]
    %v744 = vld [vmem:[%s6 + $0x10] sm:$0xff]
    %v745 = vld [vmem:[%s6 + $0x18] sm:$0xff]
    %v746 = vld [vmem:[%s6 + $0x20] sm:$0xff]
    %v747 = vld [vmem:[%s6 + $0x28] sm:$0xff]
    %v748 = vld [vmem:[%s6 + $0x30] sm:$0xff]
    %v749 = vld [vmem:[%s6 + $0x38] sm:$0xff]
    %v750 = vld [vmem:[%s6 + $0x40] sm:$0xff]
    %v751 = vld [vmem:[%s6 + $0x48] sm:$0xff]
    %v752 = vld [vmem:[%s6 + $0x50] sm:$0xff]
    %v753 = vld [vmem:[%s6 + $0x58] sm:$0xff]
    %v754 = vld [vmem:[%s6 + $0x60] sm:$0xff]
    %v755 = vld [vmem:[%s6 + $0x68] sm:$0xff]
    %v756 = vld [vmem:[%s6 + $0x70] sm:$0xff]
    %v757 = vld [vmem:[%s6 + $0x78] sm:$0xff]
    %759 = vset.pattern.permute.xlu0 0
    %760 = vperm.xlu0 %759, %v742
    %v761 = vpop.permute.xlu0 %760
    %764 = vset.pattern.permute.xlu0 0
    %765 = vperm.xlu0 %764, %v743
    %v766 = vpop.permute.xlu0 %765
    %769 = vset.pattern.permute.xlu0 0
    %770 = vperm.xlu0 %769, %v744
    %v771 = vpop.permute.xlu0 %770
    %774 = vset.pattern.permute.xlu0 0
    %775 = vperm.xlu0 %774, %v745
    %v776 = vpop.permute.xlu0 %775
    %779 = vset.pattern.permute.xlu0 0
    %780 = vperm.xlu0 %779, %v746
    %v781 = vpop.permute.xlu0 %780
    %784 = vset.pattern.permute.xlu0 0
    %785 = vperm.xlu0 %784, %v747
    %v786 = vpop.permute.xlu0 %785
    %789 = vset.pattern.permute.xlu0 0
    %790 = vperm.xlu0 %789, %v748
    %v791 = vpop.permute.xlu0 %790
    %794 = vset.pattern.permute.xlu0 0
    %795 = vperm.xlu0 %794, %v749
    %v796 = vpop.permute.xlu0 %795
    %799 = vset.pattern.permute.xlu0 0
    %800 = vperm.xlu0 %799, %v750
    %v801 = vpop.permute.xlu0 %800
    %804 = vset.pattern.permute.xlu0 0
    %805 = vperm.xlu0 %804, %v751
    %v806 = vpop.permute.xlu0 %805
    %809 = vset.pattern.permute.xlu0 0
    %810 = vperm.xlu0 %809, %v752
    %v811 = vpop.permute.xlu0 %810
    %814 = vset.pattern.permute.xlu0 0
    %815 = vperm.xlu0 %814, %v753
    %v816 = vpop.permute.xlu0 %815
    %819 = vset.pattern.permute.xlu0 0
    %820 = vperm.xlu0 %819, %v754
    %v821 = vpop.permute.xlu0 %820
    %824 = vset.pattern.permute.xlu0 0
    %825 = vperm.xlu0 %824, %v755
    %v826 = vpop.permute.xlu0 %825
    %829 = vset.pattern.permute.xlu0 0
    %830 = vperm.xlu0 %829, %v756
    %v831 = vpop.permute.xlu0 %830
    %834 = vset.pattern.permute.xlu0 0
    %835 = vperm.xlu0 %834, %v757
    %v836 = vpop.permute.xlu0 %835
    %v854 = vunpack.c.l.b16 %v724
    %v855 = vunpack.c.l.b16 %v725
    %v856 = vunpack.c.l.b16 %v726
    %v857 = vunpack.c.l.b16 %v727
    %v858 = vunpack.c.l.b16 %v728
    %v859 = vunpack.c.l.b16 %v729
    %v860 = vunpack.c.l.b16 %v730
    %v861 = vunpack.c.l.b16 %v731
    %v862 = vunpack.c.l.b16 %v732
    %v863 = vunpack.c.l.b16 %v733
    %v864 = vunpack.c.l.b16 %v734
    %v865 = vunpack.c.l.b16 %v735
    %v866 = vunpack.c.l.b16 %v736
    %v867 = vunpack.c.l.b16 %v737
    %v868 = vunpack.c.l.b16 %v738
    %v869 = vunpack.c.l.b16 %v739
    %v870 = vpack.c.b16 %v855, %v854
    %v871 = vpack.c.b16 %v857, %v856
    %v872 = vpack.c.b16 %v859, %v858
    %v873 = vpack.c.b16 %v861, %v860
    %v874 = vpack.c.b16 %v863, %v862
    %v875 = vpack.c.b16 %v865, %v864
    %v876 = vpack.c.b16 %v867, %v866
    %v877 = vpack.c.b16 %v869, %v868
    %v879 = vsel %vm239, %v870, 0
    %v882 = vsel %vm239, %v871, 0
    %v885 = vsel %vm239, %v872, 0
    %v888 = vsel %vm239, %v873, 0
    %v891 = vsel %vm239, %v874, 0
    %v894 = vsel %vm239, %v875, 0
    %v897 = vsel %vm239, %v876, 0
    %v900 = vsel %vm239, %v877, 0
    %902 = vmatprep.subr.bf16.mxu0 0
    %903 = vmatpush1.bf16.msra.mxu0 %v740
    %904 = vmatprep.subr.bf16.mxu0 0
    %905 = vmatpush1.bf16.msra.mxu0 %v741
    %906 = vmatprep.subr.bf16.mxu0 0
    %907 = vmatpush1.bf16.msra.mxu0 0
    %908 = vmatprep.subr.bf16.mxu0 0
    %909 = vmatpush1.bf16.msra.mxu0 0
    %910 = vmatprep.subr.bf16.mxu0 0
    %911 = vmatpush1.bf16.msra.mxu0 0
    %912 = vmatprep.subr.bf16.mxu0 0
    %913 = vmatpush1.bf16.msra.mxu0 0
    %914 = vmatprep.subr.bf16.mxu0 0
    %915 = vmatpush1.bf16.msra.mxu0 0
    %916 = vmatprep.subr.bf16.mxu0 0
    %917 = vmatpush1.bf16.msra.mxu0 0
    %918 = vmatprep.subr.bf16.mxu0 0
    %919 = vmatpush1.bf16.msra.mxu0 0
    %920 = vmatprep.subr.bf16.mxu0 0
    %921 = vmatpush1.bf16.msra.mxu0 0
    %922 = vmatprep.subr.bf16.mxu0 0
    %923 = vmatpush1.bf16.msra.mxu0 0
    %924 = vmatprep.subr.bf16.mxu0 0
    %925 = vmatpush1.bf16.msra.mxu0 0
    %926 = vmatprep.subr.bf16.mxu0 0
    %927 = vmatpush1.bf16.msra.mxu0 0
    %928 = vmatprep.subr.bf16.mxu0 0
    %929 = vmatpush1.bf16.msra.mxu0 0
    %930 = vmatprep.subr.bf16.mxu0 0
    %931 = vmatpush1.bf16.msra.mxu0 0
    %932 = vmatprep.subr.bf16.mxu0 0
    %933 = vmatpush1.bf16.msra.mxu0 0
    %934 = vmatprep.mubr.bf16.mxu0 0
    %935 = vmatmul.mubr.bf16.gmra.mrb[0].mxu0 %v879
    %v936 = vpop.f32.mrb[0].mxu0
    %v937 = vadd.f32 %v761, %v936
    %v938 = vpop.f32.mrb[0].mxu0
    %v939 = vpop.f32.mrb[0].mxu0
    %v940 = vadd.f32 %v766, %v939
    %v941 = vpop.f32.mrb[0].mxu0
    %942 = vmatprep.mubr.bf16.mxu0 0
    %943 = vmatmul.mubr.bf16.gmra.mrb[0].mxu0 %v882
    %v944 = vpop.f32.mrb[0].mxu0
    %v945 = vadd.f32 %v771, %v944
    %v946 = vpop.f32.mrb[0].mxu0
    %v947 = vpop.f32.mrb[0].mxu0
    %v948 = vadd.f32 %v776, %v947
    %v949 = vpop.f32.mrb[0].mxu0
    %950 = vmatprep.mubr.bf16.mxu0 0
    %951 = vmatmul.mubr.bf16.gmra.mrb[0].mxu0 %v885
    %v952 = vpop.f32.mrb[0].mxu0
    %v953 = vadd.f32 %v781, %v952
    %v954 = vpop.f32.mrb[0].mxu0
    %v955 = vpop.f32.mrb[0].mxu0
    %v956 = vadd.f32 %v786, %v955
    %v957 = vpop.f32.mrb[0].mxu0
    %958 = vmatprep.mubr.bf16.mxu0 0
    %959 = vmatmul.mubr.bf16.gmra.mrb[0].mxu0 %v888
    %v960 = vpop.f32.mrb[0].mxu0
    %v961 = vadd.f32 %v791, %v960
    %v962 = vpop.f32.mrb[0].mxu0
    %v963 = vpop.f32.mrb[0].mxu0
    %v964 = vadd.f32 %v796, %v963
    %v965 = vpop.f32.mrb[0].mxu0
    %966 = vmatprep.mubr.bf16.mxu0 0
    %967 = vmatmul.mubr.bf16.gmra.mrb[0].mxu0 %v891
    %v968 = vpop.f32.mrb[0].mxu0
    %v969 = vadd.f32 %v801, %v968
    %v970 = vpop.f32.mrb[0].mxu0
    %v971 = vpop.f32.mrb[0].mxu0
    %v972 = vadd.f32 %v806, %v971
    %v973 = vpop.f32.mrb[0].mxu0
    %974 = vmatprep.mubr.bf16.mxu0 0
    %975 = vmatmul.mubr.bf16.gmra.mrb[0].mxu0 %v894
    %v976 = vpop.f32.mrb[0].mxu0
    %v977 = vadd.f32 %v811, %v976
    %v978 = vpop.f32.mrb[0].mxu0
    %v979 = vpop.f32.mrb[0].mxu0
    %v980 = vadd.f32 %v816, %v979
    %v981 = vpop.f32.mrb[0].mxu0
    %982 = vmatprep.mubr.bf16.mxu0 0
    %983 = vmatmul.mubr.bf16.gmra.mrb[0].mxu0 %v897
    %v984 = vpop.f32.mrb[0].mxu0
    %v985 = vadd.f32 %v821, %v984
    %v986 = vpop.f32.mrb[0].mxu0
    %v987 = vpop.f32.mrb[0].mxu0
    %v988 = vadd.f32 %v826, %v987
    %v989 = vpop.f32.mrb[0].mxu0
    %990 = vmatprep.mubr.bf16.mxu0 0
    %991 = vmatmul.mubr.bf16.gmra.mrb[0].mxu0 %v900
    %v992 = vpop.f32.mrb[0].mxu0
    %v993 = vadd.f32 %v831, %v992
    %v994 = vpop.f32.mrb[0].mxu0
    %v995 = vpop.f32.mrb[0].mxu0
    %v996 = vadd.f32 %v836, %v995
    %v997 = vpop.f32.mrb[0].mxu0
    %998 = vdwg.mxu0
    %v999 = vmax.f32 %v937, %v953
    %v1000 = vmax.f32 %v940, %v956
    %v1001 = vmax.f32 %v945, %v961
    %v1002 = vmax.f32 %v948, %v964
    %v1003 = vmax.f32 %v999, %v969
    %v1004 = vmax.f32 %v1000, %v972
    %v1005 = vmax.f32 %v1001, %v977
    %v1006 = vmax.f32 %v1002, %v980
    %v1007 = vmax.f32 %v1003, %v985
    %v1008 = vmax.f32 %v1004, %v988
    %v1009 = vmax.f32 %v1005, %v993
    %v1010 = vmax.f32 %v1006, %v996
    %v1011 = vmax.f32 %v1007, %v1008
    %v1012 = vmax.f32 %v1009, %v1010
    %v1013 = vmax.f32 %v1011, %v1012
    %v1014 = vrot.slane %v1013, 4
    %v1015 = vmax.f32 %v1013, %v1014
    %v1016 = vrot.slane %v1015, 2
    %v1017 = vmax.f32 %v1015, %v1016
    %v1018 = vrot.slane %v1017, 1
    %v1019 = vmax.f32 %v1017, %v1018
    %v1020 = vsub.f32 %v937, %v1019
    %v1021 = vsub.f32 %v940, %v1019
    %v1022 = vsub.f32 %v945, %v1019
    %v1023 = vsub.f32 %v948, %v1019
    %v1024 = vsub.f32 %v953, %v1019
    %v1025 = vsub.f32 %v956, %v1019
    %v1026 = vsub.f32 %v961, %v1019
    %v1027 = vsub.f32 %v964, %v1019
    %v1028 = vsub.f32 %v969, %v1019
    %v1029 = vsub.f32 %v972, %v1019
    %v1030 = vsub.f32 %v977, %v1019
    %v1031 = vsub.f32 %v980, %v1019
    %v1032 = vsub.f32 %v985, %v1019
    %v1033 = vsub.f32 %v988, %v1019
    %v1034 = vsub.f32 %v993, %v1019
    %v1035 = vsub.f32 %v996, %v1019
    %v1036 = vmul.f32 %v1020, 1.442695
    %v1037 = vpow.pop %v1036
    %v1038 = vmul.f32 %v1021, 1.442695
    %v1039 = vpow.pop %v1038
    %v1040 = vmul.f32 %v1022, 1.442695
    %v1041 = vpow.pop %v1040
    %v1042 = vmul.f32 %v1023, 1.442695
    %v1043 = vpow.pop %v1042
    %v1044 = vmul.f32 %v1024, 1.442695
    %v1045 = vpow.pop %v1044
    %v1046 = vmul.f32 %v1025, 1.442695
    %v1047 = vpow.pop %v1046
    %v1048 = vmul.f32 %v1026, 1.442695
    %v1049 = vpow.pop %v1048
    %v1050 = vmul.f32 %v1027, 1.442695
    %v1051 = vpow.pop %v1050
    %v1052 = vmul.f32 %v1028, 1.442695
    %v1053 = vpow.pop %v1052
    %v1054 = vmul.f32 %v1029, 1.442695
    %v1055 = vpow.pop %v1054
    %v1056 = vmul.f32 %v1030, 1.442695
    %v1057 = vpow.pop %v1056
    %v1058 = vmul.f32 %v1031, 1.442695
    %v1059 = vpow.pop %v1058
    %v1060 = vmul.f32 %v1032, 1.442695
    %v1061 = vpow.pop %v1060
    %v1062 = vmul.f32 %v1033, 1.442695
    %v1063 = vpow.pop %v1062
    %v1064 = vmul.f32 %v1034, 1.442695
    %v1065 = vpow.pop %v1064
    %v1066 = vmul.f32 %v1035, 1.442695
    %v1067 = vpow.pop %v1066
    %v1068 = vadd.f32 %v1037, %v1039
    %v1069 = vadd.f32 %v1068, %v1041
    %v1070 = vadd.f32 %v1069, %v1043
    %v1071 = vadd.f32 %v1070, %v1045
    %v1072 = vadd.f32 %v1071, %v1047
    %v1073 = vadd.f32 %v1072, %v1049
    %v1074 = vadd.f32 %v1073, %v1051
    %v1075 = vadd.f32 %v1074, %v1053
    %v1076 = vadd.f32 %v1075, %v1055
    %v1077 = vadd.f32 %v1076, %v1057
    %v1078 = vadd.f32 %v1077, %v1059
    %v1079 = vadd.f32 %v1078, %v1061
    %v1080 = vadd.f32 %v1079, %v1063
    %v1081 = vadd.f32 %v1080, %v1065
    %v1082 = vadd.f32 %v1081, %v1067
    %v1083 = vrot.slane %v1082, 4
    %v1084 = vadd.f32 %v1082, %v1083
    %v1085 = vrot.slane %v1084, 2
    %v1086 = vadd.f32 %v1084, %v1085
    %v1087 = vrot.slane %v1086, 1
    %v1088 = vadd.f32 %v1086, %v1087
    %v1089 = vlog2.pop %v1088
    %v1090 = vmul.f32 %v1089, 0.6931472
    %v1091 = vsub.f32 %v1020, %v1090
    %v1092 = vsub.f32 %v1021, %v1090
    %v1093 = vsub.f32 %v1022, %v1090
    %v1094 = vsub.f32 %v1023, %v1090
    %v1095 = vsub.f32 %v1024, %v1090
    %v1096 = vsub.f32 %v1025, %v1090
    %v1097 = vsub.f32 %v1026, %v1090
    %v1098 = vsub.f32 %v1027, %v1090
    %v1099 = vsub.f32 %v1028, %v1090
    %v1100 = vsub.f32 %v1029, %v1090
    %v1101 = vsub.f32 %v1030, %v1090
    %v1102 = vsub.f32 %v1031, %v1090
    %v1103 = vsub.f32 %v1032, %v1090
    %v1104 = vsub.f32 %v1033, %v1090
    %v1105 = vsub.f32 %v1034, %v1090
    %v1106 = vsub.f32 %v1035, %v1090
    %1107 = vst [vmem:[#allocation2] sm:$0xff] %v1091
    %1108 = vst [vmem:[#allocation2 + $0x8] sm:$0xff] %v1092
    %1109 = vst [vmem:[#allocation2 + $0x10] sm:$0xff] %v1093
    %1110 = vst [vmem:[#allocation2 + $0x18] sm:$0xff] %v1094
    %1111 = vst [vmem:[#allocation2 + $0x20] sm:$0xff] %v1095
    %1112 = vst [vmem:[#allocation2 + $0x28] sm:$0xff] %v1096
    %1113 = vst [vmem:[#allocation2 + $0x30] sm:$0xff] %v1097
    %1114 = vst [vmem:[#allocation2 + $0x38] sm:$0xff] %v1098
    %1115 = vst [vmem:[#allocation2 + $0x40] sm:$0xff] %v1099
    %1116 = vst [vmem:[#allocation2 + $0x48] sm:$0xff] %v1100
    %1117 = vst [vmem:[#allocation2 + $0x50] sm:$0xff] %v1101
    %1118 = vst [vmem:[#allocation2 + $0x58] sm:$0xff] %v1102
    %1119 = vst [vmem:[#allocation2 + $0x60] sm:$0xff] %v1103
    %1120 = vst [vmem:[#allocation2 + $0x68] sm:$0xff] %v1104
    %1121 = vst [vmem:[#allocation2 + $0x70] sm:$0xff] %v1105
    %1122 = vst [vmem:[#allocation2 + $0x78] sm:$0xff] %v1106
    // Predicated region
    $region30: #{tpu_custom_call.1} parent=1 // pred_check
      _
    $region31: #{tpu_custom_call.1} parent=1 // pred_check_branch
      %1124 = sbr.rel (0) target = $region33
    $region32: #{tpu_custom_call.1} parent=1 // pred_region
      %s1126 = ssub.s32 2048, 2048
      %1127 = vsyncadd [#allocation3], %s1126
      %s1128 = sshll.u32 [#allocation2], 4
      %s1129 = int_to_ptr.vmem [resolvable:$true] %s1128
      %1134 = dma.vmem_to_hbm [thread:$0]  %s1129, 2048, %s7, [#allocation3], 128, 128, 8
    $region33: #{tpu_custom_call.1} parent=1 // pred_fallthru
      _
    // Predicated region
    $region34: #{tpu_custom_call.1} parent=1 // pred_check
      _
    $region35: #{tpu_custom_call.1} parent=1 // pred_check_branch
      %1136 = sbr.rel (0) target = $region37
    $region36: #{tpu_custom_call.1} parent=1 // pred_region
      %s1138 = ssub.s32 2560, 2560
      %1139 = vsyncadd [#allocation5], %s1138
      %s1140 = sshll.u32 [#allocation4], 4
      %s1141 = int_to_ptr.vmem [resolvable:$true] %s1140
      %1146 = dma.vmem_to_hbm [thread:$0]  %s1141, 2560, %s8, [#allocation5], 128, 128, 8
    $region37: #{tpu_custom_call.1} parent=1 // pred_fallthru
      _
    // Predicated region
    $region38: #{tpu_custom_call.1} parent=1 // pred_check
      _
    $region39: #{tpu_custom_call.1} parent=1 // pred_check_branch
      %1148 = sbr.rel (0) target = $region41
    $region40: #{tpu_custom_call.1} parent=1 // pred_region
      %1149 = dma.done [#allocation3], 2048
    $region41: #{tpu_custom_call.1} parent=1 // pred_fallthru
      _
    // Predicated region
    $region42: #{tpu_custom_call.1} parent=1 // pred_check
      _
    $region43: #{tpu_custom_call.1} parent=1 // pred_check_branch
      %1151 = sbr.rel (0) target = $region45
    $region44: #{tpu_custom_call.1} parent=1 // pred_region
      %1152 = dma.done [#allocation5], 2560
    $region45: #{tpu_custom_call.1} parent=1 // pred_fallthru
      _
    %1153 = vsyncpa [#allocation3], 1
    %1154 = vsyncpa [#allocation5], 1

</llo_original>
